<compile_context>
chip_gen: v6e
topology: v6e:2x2x1
jax: 0.10.0
libtpu: 0.0.40
codegen_flags: <defaults>
</compile_context>

<pallas_src>
import jax
import jax.numpy as jnp
from jax.experimental import pallas as pl
from jax.experimental.pallas import tpu as pltpu


def _round_up(v, m):
    return (v + m - 1) // m * m


def _cast_pad_2d(arr, rows, cols, dtype):
    """Cast and zero-pad a 2-D array only when needed (pass-through in the aligned case)."""
    if arr.dtype != dtype:
        arr = arr.astype(dtype)
    r, c = arr.shape
    if r == rows and c == cols:
        return arr
    return jnp.zeros((rows, cols), dtype).at[:r, :c].set(arr)


def _lora_kernel_out_acc(x_ref, wt_ref, bias_ref, xa_ref, bs_ref, o_ref):
    """f32 output: accumulate directly in the resident output block (no scratch)."""
    k = pl.program_id(2)
    partial = jnp.dot(x_ref[...], wt_ref[...], preferred_element_type=jnp.float32)

    @pl.when(k == 0)
    def _init():
        o_ref[...] = (
            bias_ref[...]
            + jnp.dot(xa_ref[...], bs_ref[...], preferred_element_type=jnp.float32)
            + partial
        )

    @pl.when(k > 0)
    def _acc():
        o_ref[...] += partial


def _lora_kernel_scratch(x_ref, wt_ref, bias_ref, xa_ref, bs_ref, o_ref, acc_ref):
    """Non-f32 output: f32 VMEM accumulator, cast on the final K step."""
    k = pl.program_id(2)
    partial = jnp.dot(x_ref[...], wt_ref[...], preferred_element_type=jnp.float32)

    @pl.when(k == 0)
    def _init():
        acc_ref[...] = (
            bias_ref[...]
            + jnp.dot(xa_ref[...], bs_ref[...], preferred_element_type=jnp.float32)
            + partial
        )

    @pl.when(k > 0)
    def _acc():
        acc_ref[...] += partial

    @pl.when(k == pl.num_programs(2) - 1)
    def _store():
        o_ref[...] = acc_ref[...].astype(o_ref.dtype)


def make_linear_with_lora(w, b, a, bb, alpha, *, operand_dtype=jnp.bfloat16,
                          tm=512, tn=512, tk=1024):
    """Prepare (transpose/cast/pad) all parameters once; return a callable of x.

    w: (out_dim, in_dim), b: (out_dim,), a: (in_dim, rank), bb: (rank, out_dim).
    operand_dtype: MXU operand dtype (default bf16); accumulation is always f32.
    """
    out_dim, in_dim = w.shape
    rank = a.shape[1]
    operand_dtype = jnp.dtype(operand_dtype)

    tn_eff = min(tn, _round_up(out_dim, 128))
    tk_eff = min(tk, _round_up(in_dim, 128))
    n_pad = _round_up(out_dim, tn_eff)
    k_pad = _round_up(in_dim, tk_eff)
    rank_pad = _round_up(rank, 128)          # lane-dense LoRA tiles

    # --- One-time parameter preparation (hoisted out of the per-call path) ---
    wt = _cast_pad_2d(w.T, k_pad, n_pad, operand_dtype)                       # (K, N)
    bias = _cast_pad_2d(b.reshape(1, out_dim), 1, n_pad, jnp.float32)         # f32 epilogue math
    bs = _cast_pad_2d(alpha * bb, rank_pad, n_pad, operand_dtype)             # alpha folded into B
    a_f32 = a.astype(jnp.float32)                                             # for x @ A down-proj

    op_bytes = operand_dtype.itemsize
    m_align = 16 if op_bytes < 4 else 8

    def apply(x):
        lead = x.shape[:-1]
        out_dtype = jnp.dtype(x.dtype)
        x2 = x.reshape(-1, in_dim)
        m = x2.shape[0]

        tm_eff = min(tm, _round_up(m, m_align))
        m_pad = _round_up(m, tm_eff)

        # LoRA down-projection (tiny rank) in f32, then cast for the MXU.
        xa = (x2.astype(jnp.float32) @ a_f32).astype(operand_dtype)           # (M, rank)
        xa_p = _cast_pad_2d(xa, m_pad, rank_pad, operand_dtype)
        x_p = _cast_pad_2d(x2, m_pad, k_pad, operand_dtype)

        m_tiles = m_pad // tm_eff
        n_tiles = n_pad // tn_eff
        k_tiles = k_pad // tk_eff
        # N outermost -> megacore shards disjoint W columns across TensorCores (v7x).
        grid = (n_tiles, m_tiles, k_tiles)

        # Deeper weight-stream buffering for decode-like shapes with a long K loop.
        w_spec = pl.BlockSpec((tk_eff, tn_eff), lambda j, i, k: (k, j))
        if m_tiles == 1 and k_tiles >= 3:
            try:
                w_spec = pl.BlockSpec((tk_eff, tn_eff), lambda j, i, k: (k, j),
                                      pipeline_mode=pl.Buffered(3))
            except (TypeError, AttributeError):
                pass

        in_specs = [
            pl.BlockSpec((tm_eff, tk_eff), lambda j, i, k: (i, k)),           # x
            w_spec,                                                           # W^T (pre-transposed)
            pl.BlockSpec((1, tn_eff), lambda j, i, k: (0, j)),                # bias (f32)
            pl.BlockSpec((tm_eff, rank_pad), lambda j, i, k: (i, 0)),         # x @ A
            pl.BlockSpec((rank_pad, tn_eff), lambda j, i, k: (0, j)),         # alpha * B
        ]
        out_spec = pl.BlockSpec((tm_eff, tn_eff), lambda j, i, k: (i, j))

        acc_in_out = out_dtype == jnp.dtype(jnp.float32)
        if acc_in_out:
            kernel = _lora_kernel_out_acc
            scratch = ()
        else:
            kernel = _lora_kernel_scratch
            scratch = (pltpu.VMEM((tm_eff, tn_eff), jnp.float32),)

        out_bytes = out_dtype.itemsize
        cost = pl.CostEstimate(
            flops=2 * m_pad * k_pad * n_pad + 2 * m_pad * rank_pad * n_pad,
            transcendentals=0,
            bytes_accessed=(
                (m_pad * k_pad * n_tiles + k_pad * n_pad
                 + m_pad * rank_pad * n_tiles + rank_pad * n_pad) * op_bytes
                + n_pad * 4
                + m_pad * n_pad * out_bytes
            ),
        )

        vmem_need = (
            2 * (tm_eff * tk_eff + tk_eff * tn_eff
                 + tm_eff * rank_pad + rank_pad * tn_eff) * op_bytes
            + 2 * tn_eff * 4
            + 2 * tm_eff * tn_eff * out_bytes
            + (0 if acc_in_out else tm_eff * tn_eff * 4)
        )
        try:
            vmem_cap = int(getattr(pltpu.get_tpu_info(), "vmem_capacity_bytes",
                                   64 * 1024 * 1024))
        except Exception:
            vmem_cap = 64 * 1024 * 1024
        vmem_budget = (vmem_cap * 3) // 4          # headroom for Mosaic internal scratch
        vmem_limit = int(min(max(4 * vmem_need, 32 * 1024 * 1024), vmem_budget))

        out = pl.pallas_call(
            kernel,
            out_shape=jax.ShapeDtypeStruct((m_pad, n_pad), out_dtype),
            grid_spec=pltpu.PrefetchScalarGridSpec(
                num_scalar_prefetch=0,
                grid=grid,
                in_specs=in_specs,
                out_specs=out_spec,
                scratch_shapes=scratch,
            ),
            compiler_params=pltpu.CompilerParams(
                dimension_semantics=("parallel", "parallel", "arbitrary"),
                vmem_limit_bytes=vmem_limit,
            ),
            cost_estimate=cost,
        )(x_p, wt, bias, xa_p, bs)

        return out[:m, :out_dim].reshape(*lead, out_dim)

    return apply


def linear_with_lora(x, w, b, a, bb, alpha, **kwargs):
    """One-shot convenience wrapper (prefer make_linear_with_lora to amortise weight prep)."""
    return make_linear_with_lora(w, b, a, bb, alpha, **kwargs)(x)


if __name__ == "__main__":
    # Shapes consistent with the module: Linear(in_dim=32, out_dim=32), rank=4, alpha=2.0;
    # input x: (batch=2, seq=8, in_dim=32).
    batch, seq, in_dim, out_dim, rank = 2, 8, 32, 32, 4
    alpha = 2.0

    key = jax.random.PRNGKey(0)
    kx, kw, kb, ka, kbb, kx2, kw2, kb2, ka2, kbb2 = jax.random.split(key, 10)

    x = jax.random.normal(kx, (batch, seq, in_dim), dtype=jnp.float32)
    w = jax.random.normal(kw, (out_dim, in_dim), dtype=jnp.float32) * 0.1
    b = jax.random.normal(kb, (out_dim,), dtype=jnp.float32) * 0.1
    # LoRA params matching LoRALayer.__init__: A ~ randn/sqrt(rank), B = zeros.
    a = jax.random.normal(ka, (in_dim, rank), dtype=jnp.float32) / jnp.sqrt(jnp.float32(rank))
    bb0 = jnp.zeros((rank, out_dim), dtype=jnp.float32)
    bb_nz = jax.random.normal(kbb, (rank, out_dim), dtype=jnp.float32) * 0.1

    def ref_fn(x, w, b, a, bb, alpha):
        return x @ w.T + b + alpha * ((x @ a) @ bb)

    # 1) Module-init configuration (B = 0), f32 MXU operands.
    f0 = make_linear_with_lora(w, b, a, bb0, alpha, operand_dtype=jnp.float32)
    out0 = jax.block_until_ready(f0(x))
    ref0 = ref_fn(x, w, b, a, bb0, alpha)
    assert out0.shape == (batch, seq, out_dim)
    assert jnp.allclose(out0, ref0, atol=2e-2, rtol=2e-2), "mismatch vs reference (B=0)"

    # 2) Nonzero B so the fused LoRA path contributes, f32 operands.
    f1 = make_linear_with_lora(w, b, a, bb_nz, alpha, operand_dtype=jnp.float32)
    out1 = jax.block_until_ready(f1(x))
    ref1 = ref_fn(x, w, b, a, bb_nz, alpha)
    assert jnp.allclose(out1, ref1, atol=2e-2, rtol=2e-2), "mismatch vs reference (B!=0)"

    # 3) Default bf16 MXU operands with f32 accumulation (recommended on v5e/v6e/v7x).
    f2 = make_linear_with_lora(w, b, a, bb_nz, alpha)
    out2 = jax.block_until_ready(f2(x))
    assert jnp.allclose(out2, ref1, atol=1.5e-1, rtol=1.5e-1), "mismatch vs reference (bf16)"

    # 4) bf16 activations/output -> exercises the scratch-accumulator kernel variant.
    out3 = jax.block_until_ready(f2(x.astype(jnp.bfloat16)))
    assert out3.dtype == jnp.bfloat16
    assert jnp.allclose(out3.astype(jnp.float32), ref1, atol=2e-1, rtol=2e-1), \
        "mismatch vs reference (bf16 activations)"

    # 5) Larger, 128-aligned shape: exercises multi-K accumulation, the no-padding fast path
    #    and the Buffered(3) weight stream (single M tile, k_tiles >= 3).
    in2, outd2 = 512, 256
    x_l = jax.random.normal(kx2, (batch, seq, in2), dtype=jnp.float32)
    w_l = jax.random.normal(kw2, (outd2, in2), dtype=jnp.float32) * 0.05
    b_l = jax.random.normal(kb2, (outd2,), dtype=jnp.float32) * 0.1
    a_l = jax.random.normal(ka2, (in2, rank), dtype=jnp.float32) / jnp.sqrt(jnp.float32(rank))
    bb_l = jax.random.normal(kbb2, (rank, outd2), dtype=jnp.float32) * 0.05
    f3 = make_linear_with_lora(w_l, b_l, a_l, bb_l, alpha, operand_dtype=jnp.float32, tk=128)
    out4 = jax.block_until_ready(f3(x_l))
    ref4 = ref_fn(x_l, w_l, b_l, a_l, bb_l, alpha)
    assert jnp.allclose(out4, ref4, atol=3e-2, rtol=3e-2), "mismatch vs reference (large/aligned)"

    print("KERNEL_OK")
</pallas_src>

<mosaic_0001>
module attributes {stable_mosaic.version = 11 : i64} {
  func.func @_lora_kernel_out_acc(%arg0: i32, %arg1: i32, %arg2: i32, %arg3: memref<16x128xf32, #tpu.memory_space<vmem>>, %arg4: memref<128x128xf32, #tpu.memory_space<vmem>>, %arg5: memref<1x128xf32, #tpu.memory_space<vmem>>, %arg6: memref<16x128xf32, #tpu.memory_space<vmem>>, %arg7: memref<128x128xf32, #tpu.memory_space<vmem>>, %arg8: memref<16x128xf32, #tpu.memory_space<vmem>>) attributes {dimension_semantics = [#tpu.dimension_semantics<parallel>, #tpu.dimension_semantics<parallel>, #tpu.dimension_semantics<arbitrary>], iteration_bounds = array<i64: 1, 1, 1>, scalar_prefetch = 0 : i64, scratch_operands = 0 : i64, tpu.core_type = #tpu.core_type<tc>, window_params = [{transform_indices = @transform_0, window_bounds = array<i64: 16, 128>}, {transform_indices = @transform_1, window_bounds = array<i64: 128, 128>}, {transform_indices = @transform_2, window_bounds = array<i64: 1, 128>}, {transform_indices = @transform_3, window_bounds = array<i64: 16, 128>}, {transform_indices = @transform_4, window_bounds = array<i64: 128, 128>}, {transform_indices = @transform_5, window_bounds = array<i64: 16, 128>}]} {
    %c0 = arith.constant 0 : index
    %c0_0 = arith.constant 0 : index
    %0 = vector.load %arg3[%c0, %c0_0] : memref<16x128xf32, #tpu.memory_space<vmem>>, vector<16x128xf32>
    %c0_1 = arith.constant 0 : index
    %c0_2 = arith.constant 0 : index
    %1 = vector.load %arg4[%c0_1, %c0_2] : memref<128x128xf32, #tpu.memory_space<vmem>>, vector<128x128xf32>
    %cst = arith.constant dense<0.000000e+00> : vector<16x128xf32>
    %2 = tpu.matmul %0, %1, %cst {dimension_numbers = #tpu.dot_dimension_numbers<[1], [0], [0], [1], [0, 0, 1, 1], [], []>} : vector<16x128xf32>, vector<128x128xf32>, vector<16x128xf32> -> vector<16x128xf32>
    %c0_i32 = arith.constant 0 : i32
    %3 = arith.cmpi eq, %arg2, %c0_i32 : i32
    %4 = arith.extui %3 : i1 to i32
    %c0_i32_3 = arith.constant 0 : i32
    %5 = arith.cmpi ne, %4, %c0_i32_3 : i32
    scf.if %5 {
      %c0_6 = arith.constant 0 : index
      %c0_7 = arith.constant 0 : index
      %9 = vector.load %arg5[%c0_6, %c0_7] : memref<1x128xf32, #tpu.memory_space<vmem>>, vector<1x128xf32>
      %c0_8 = arith.constant 0 : index
      %c0_9 = arith.constant 0 : index
      %10 = vector.load %arg6[%c0_8, %c0_9] : memref<16x128xf32, #tpu.memory_space<vmem>>, vector<16x128xf32>
      %c0_10 = arith.constant 0 : index
      %c0_11 = arith.constant 0 : index
      %11 = vector.load %arg7[%c0_10, %c0_11] : memref<128x128xf32, #tpu.memory_space<vmem>>, vector<128x128xf32>
      %cst_12 = arith.constant dense<0.000000e+00> : vector<16x128xf32>
      %12 = tpu.matmul %10, %11, %cst_12 {dimension_numbers = #tpu.dot_dimension_numbers<[1], [0], [0], [1], [0, 0, 1, 1], [], []>} : vector<16x128xf32>, vector<128x128xf32>, vector<16x128xf32> -> vector<16x128xf32>
      %13 = vector.broadcast %9 : vector<1x128xf32> to vector<16x128xf32>
      %14 = arith.addf %13, %12 : vector<16x128xf32>
      %15 = arith.addf %14, %2 : vector<16x128xf32>
      %c0_13 = arith.constant 0 : index
      %c0_14 = arith.constant 0 : index
      %16 = vector.load %arg8[%c0_13, %c0_14] : memref<16x128xf32, #tpu.memory_space<vmem>>, vector<16x128xf32>
      tpu.vector_store %arg8[%c0_13, %c0_14], %15 {strides = array<i32>} : memref<16x128xf32, #tpu.memory_space<vmem>>, vector<16x128xf32>,
    } else {
    }
    %c0_i32_4 = arith.constant 0 : i32
    %6 = arith.cmpi sgt, %arg2, %c0_i32_4 : i32
    %7 = arith.extui %6 : i1 to i32
    %c0_i32_5 = arith.constant 0 : i32
    %8 = arith.cmpi ne, %7, %c0_i32_5 : i32
    scf.if %8 {
      %c0_6 = arith.constant 0 : index
      %c0_7 = arith.constant 0 : index
      %9 = vector.load %arg8[%c0_6, %c0_7] : memref<16x128xf32, #tpu.memory_space<vmem>>, vector<16x128xf32>
      %10 = arith.addf %9, %2 : vector<16x128xf32>
      %c0_8 = arith.constant 0 : index
      %c0_9 = arith.constant 0 : index
      %11 = vector.load %arg8[%c0_8, %c0_9] : memref<16x128xf32, #tpu.memory_space<vmem>>, vector<16x128xf32>
      tpu.vector_store %arg8[%c0_8, %c0_9], %10 {strides = array<i32>} : memref<16x128xf32, #tpu.memory_space<vmem>>, vector<16x128xf32>,
    } else {
    }
    return
  }
  func.func @transform_0(%arg0: i32, %arg1: i32, %arg2: i32) -> (i32, i32) {
    %c0_i32 = arith.constant 0 : i32
    return %arg1, %arg2 : i32, i32
  }
  func.func @transform_1(%arg0: i32, %arg1: i32, %arg2: i32) -> (i32, i32) {
    %c0_i32 = arith.constant 0 : i32
    return %arg2, %arg0 : i32, i32
  }
  func.func @transform_2(%arg0: i32, %arg1: i32, %arg2: i32) -> (i32, i32) {
    %c0_i32 = arith.constant 0 : i32
    %c0_i32_0 = arith.constant 0 : i32
    return %c0_i32, %arg0 : i32, i32
  }
  func.func @transform_3(%arg0: i32, %arg1: i32, %arg2: i32) -> (i32, i32) {
    %c0_i32 = arith.constant 0 : i32
    %c0_i32_0 = arith.constant 0 : i32
    return %arg1, %c0_i32 : i32, i32
  }
  func.func @transform_4(%arg0: i32, %arg1: i32, %arg2: i32) -> (i32, i32) {
    %c0_i32 = arith.constant 0 : i32
    %c0_i32_0 = arith.constant 0 : i32
    return %c0_i32, %arg0 : i32, i32
  }
  func.func @transform_5(%arg0: i32, %arg1: i32, %arg2: i32) -> (i32, i32) {
    %c0_i32 = arith.constant 0 : i32
    return %arg1, %arg0 : i32, i32
  }
}

</mosaic_0001>

<llo_original>
// kernel: tpu_custom_call.1
$region0: #{tpu_custom_call.1}
  #allocation0 [shape = 'u32[]', space=smem, size = 0x4, offset = 0x4, fixed_abs, tag = 'smem constant byte address 0x4 - core index']
  #allocation1 [shape = 'u32[144,128]{1,0:T(1,128)}', space=vmem, size = 0x12000, scoped, tag = 'internal scratch']
  %s0 = inlined_call_operand.hbm [shape: f32[16,128], index: 0, kind: input, shape index: {}]
  %s1 = inlined_call_operand.hbm [shape: f32[128,128], index: 1, kind: input, shape index: {}]
  %s2 = inlined_call_operand.vmem [shape: f32[1,128], index: 2, kind: input, shape index: {}]
  %s3 = inlined_call_operand.hbm [shape: f32[16,128], index: 3, kind: input, shape index: {}]
  %s4 = inlined_call_operand.hbm [shape: f32[128,128], index: 4, kind: input, shape index: {}]
  %s5 = inlined_call_operand.hbm [shape: f32[16,128], index: 5, kind: output, shape index: {}]
  %s6 = sld [smem:[#allocation0]]
  $region54: #{tpu_custom_call.1} parent=0
    _
  %s8 = ssub.s32 1, %s6
  %s9 = scalar_select 0, %s8, %s6
  $region1: #{tpu_custom_call.1} parent=0
    #allocation2 [shape = 'u8[8192]{0}', space=vmem, size = 0x2000, scoped, tag = 'input window, operand 0, single buffered']
    #allocation3 [shape = 's32[1]{0}', space=sflag, size = 0x4, scoped, tag = 'scoped memory for tpu_custom_call.1']
    #allocation4 [shape = 's32[1]{0}', space=sflag, size = 0x4, scoped, tag = 'scoped memory for tpu_custom_call.1']
    #allocation5 [shape = 'u8[65536]{0}', space=vmem, size = 0x10000, scoped, tag = 'input window, operand 1, single buffered']
    #allocation6 [shape = 's32[1]{0}', space=sflag, size = 0x4, scoped, tag = 'scoped memory for tpu_custom_call.1']
    #allocation7 [shape = 'u8[8192]{0}', space=vmem, size = 0x2000, scoped, tag = 'input window, operand 3, single buffered']
    #allocation8 [shape = 'u8[65536]{0}', space=vmem, size = 0x10000, scoped, tag = 'input window, operand 4, single buffered']
    #allocation9 [shape = 's32[1]{0}', space=sflag, size = 0x4, scoped, tag = 'scoped memory for tpu_custom_call.1']
    #allocation10 [shape = 'u8[8192]{0}', space=vmem, size = 0x2000, scoped, tag = 'output window, operand 0, single buffered']
    %10 = vsyncpa [#allocation3], 0
    %11 = vsyncpa [#allocation6], 0
    %12 = vsyncpa [#allocation9], 0
    %13 = vsyncpa [#allocation4], 0
    // Predicated region
    $region2: #{tpu_custom_call.1} parent=1 // pred_check
      _
    $region3: #{tpu_custom_call.1} parent=1 // pred_check_branch
      %15 = sbr.rel (0) target = $region5
    $region4: #{tpu_custom_call.1} parent=1 // pred_region
      %s17 = ssub.s32 256, 256
      %18 = vsyncadd [#allocation3], %s17
      %s19 = sshll.u32 [#allocation2], 4
      %s20 = int_to_ptr.vmem [resolvable:$true] %s19
      %25 = dma.hbm_to_vmem [thread:$0]  %s0, 256, %s20, [#allocation3], 128, 128, 8
    $region5: #{tpu_custom_call.1} parent=1 // pred_fallthru
      _
    // Predicated region
    $region6: #{tpu_custom_call.1} parent=1 // pred_check
      _
    $region7: #{tpu_custom_call.1} parent=1 // pred_check_branch
      %27 = sbr.rel (0) target = $region9
    $region8: #{tpu_custom_call.1} parent=1 // pred_region
      %s29 = ssub.s32 2048, 2048
      %30 = vsyncadd [#allocation6], %s29
      %s31 = sshll.u32 [#allocation5], 4
      %s32 = int_to_ptr.vmem [resolvable:$true] %s31
      %37 = dma.hbm_to_vmem [thread:$0]  %s1, 2048, %s32, [#allocation6], 128, 128, 8
    $region9: #{tpu_custom_call.1} parent=1 // pred_fallthru
      _
    // Predicated region
    $region10: #{tpu_custom_call.1} parent=1 // pred_check
      _
    $region11: #{tpu_custom_call.1} parent=1 // pred_check_branch
      %39 = sbr.rel (0) target = $region13
    $region12: #{tpu_custom_call.1} parent=1 // pred_region
      _
    $region13: #{tpu_custom_call.1} parent=1 // pred_fallthru
      _
    // Predicated region
    $region14: #{tpu_custom_call.1} parent=1 // pred_check
      _
    $region15: #{tpu_custom_call.1} parent=1 // pred_check_branch
      %41 = sbr.rel (0) target = $region17
    $region16: #{tpu_custom_call.1} parent=1 // pred_region
      %s43 = ssub.s32 256, 256
      %44 = vsyncadd [#allocation6], %s43
      %s45 = sshll.u32 [#allocation7], 4
      %s46 = int_to_ptr.vmem [resolvable:$true] %s45
      %51 = dma.hbm_to_vmem [thread:$0]  %s3, 256, %s46, [#allocation6], 128, 128, 8
    $region17: #{tpu_custom_call.1} parent=1 // pred_fallthru
      _
    // Predicated region
    $region18: #{tpu_custom_call.1} parent=1 // pred_check
      _
    $region19: #{tpu_custom_call.1} parent=1 // pred_check_branch
      %53 = sbr.rel (0) target = $region21
    $region20: #{tpu_custom_call.1} parent=1 // pred_region
      %s55 = ssub.s32 2048, 2048
      %56 = vsyncadd [#allocation9], %s55
      %s57 = sshll.u32 [#allocation8], 4
      %s58 = int_to_ptr.vmem [resolvable:$true] %s57
      %63 = dma.hbm_to_vmem [thread:$0]  %s4, 2048, %s58, [#allocation9], 128, 128, 8
    $region21: #{tpu_custom_call.1} parent=1 // pred_fallthru
      _
    // Predicated region
    $region22: #{tpu_custom_call.1} parent=1 // pred_check
      _
    $region23: #{tpu_custom_call.1} parent=1 // pred_check_branch
      %65 = sbr.rel (0) target = $region25
    $region24: #{tpu_custom_call.1} parent=1 // pred_region
      %66 = dma.done [#allocation3], 256
    $region25: #{tpu_custom_call.1} parent=1 // pred_fallthru
      _
    // Predicated region
    $region26: #{tpu_custom_call.1} parent=1 // pred_check
      _
    $region27: #{tpu_custom_call.1} parent=1 // pred_check_branch
      %68 = sbr.rel (0) target = $region29
    $region28: #{tpu_custom_call.1} parent=1 // pred_region
      %69 = dma.done [#allocation6], 2048
    $region29: #{tpu_custom_call.1} parent=1 // pred_fallthru
      _
    // Predicated region
    $region30: #{tpu_custom_call.1} parent=1 // pred_check
      _
    $region31: #{tpu_custom_call.1} parent=1 // pred_check_branch
      %71 = sbr.rel (0) target = $region33
    $region32: #{tpu_custom_call.1} parent=1 // pred_region
      %72 = dma.done [#allocation6], 256
    $region33: #{tpu_custom_call.1} parent=1 // pred_fallthru
      _
    // Predicated region
    $region34: #{tpu_custom_call.1} parent=1 // pred_check
      _
    $region35: #{tpu_custom_call.1} parent=1 // pred_check_branch
      %74 = sbr.rel (0) target = $region37
    $region36: #{tpu_custom_call.1} parent=1 // pred_region
      %75 = dma.done [#allocation9], 2048
    $region37: #{tpu_custom_call.1} parent=1 // pred_fallthru
      _
    %v76 = vld [vmem:[#allocation2] sm:$0xff]
    %v77 = vld [vmem:[#allocation2 + $0x8] sm:$0xff]
    %v78 = vld [vmem:[#allocation5] sm:$0xff]
    %v79 = vld [vmem:[#allocation5 + $0x8] sm:$0xff]
    %v80 = vld [vmem:[#allocation5 + $0x10] sm:$0xff]
    %v81 = vld [vmem:[#allocation5 + $0x18] sm:$0xff]
    %v82 = vld [vmem:[#allocation5 + $0x20] sm:$0xff]
    %v83 = vld [vmem:[#allocation5 + $0x28] sm:$0xff]
    %v84 = vld [vmem:[#allocation5 + $0x30] sm:$0xff]
    %v85 = vld [vmem:[#allocation5 + $0x38] sm:$0xff]
    %v86 = vld [vmem:[#allocation5 + $0x40] sm:$0xff]
    %v87 = vld [vmem:[#allocation5 + $0x48] sm:$0xff]
    %v88 = vld [vmem:[#allocation5 + $0x50] sm:$0xff]
    %v89 = vld [vmem:[#allocation5 + $0x58] sm:$0xff]
    %v90 = vld [vmem:[#allocation5 + $0x60] sm:$0xff]
    %v91 = vld [vmem:[#allocation5 + $0x68] sm:$0xff]
    %v92 = vld [vmem:[#allocation5 + $0x70] sm:$0xff]
    %v93 = vld [vmem:[#allocation5 + $0x78] sm:$0xff]
    %94 = vmatprep.subr.mxu0 0.0
    %95 = vmatpush1.msra.mxu0 %v93
    %96 = vmatprep.subr.mxu0 0.0
    %97 = vmatpush1.msra.mxu0 %v92
    %98 = vmatprep.subr.mxu0 0.0
    %99 = vmatpush1.msra.mxu0 %v91
    %100 = vmatprep.subr.mxu0 0.0
    %101 = vmatpush1.msra.mxu0 %v90
    %102 = vmatprep.subr.mxu0 0.0
    %103 = vmatpush1.msra.mxu0 %v89
    %104 = vmatprep.subr.mxu0 0.0
    %105 = vmatpush1.msra.mxu0 %v88
    %106 = vmatprep.subr.mxu0 0.0
    %107 = vmatpush1.msra.mxu0 %v87
    %108 = vmatprep.subr.mxu0 0.0
    %109 = vmatpush1.msra.mxu0 %v86
    %110 = vmatprep.subr.mxu0 0.0
    %111 = vmatpush1.msra.mxu0 %v85
    %112 = vmatprep.subr.mxu0 0.0
    %113 = vmatpush1.msra.mxu0 %v84
    %114 = vmatprep.subr.mxu0 0.0
    %115 = vmatpush1.msra.mxu0 %v83
    %116 = vmatprep.subr.mxu0 0.0
    %117 = vmatpush1.msra.mxu0 %v82
    %118 = vmatprep.subr.mxu0 0.0
    %119 = vmatpush1.msra.mxu0 %v81
    %120 = vmatprep.subr.mxu0 0.0
    %121 = vmatpush1.msra.mxu0 %v80
    %122 = vmatprep.subr.mxu0 0.0
    %123 = vmatpush1.msra.mxu0 %v79
    %124 = vmatprep.subr.mxu0 0.0
    %125 = vmatpush1.msra.mxu0 %v78
    %126 = vmatprep.subr.mxu0 0.0
    %127 = vmatpush2.msra.mxu0 0.0
    %128 = vmatprep.subr.mxu0 0.0
    %129 = vmatpush2.msra.mxu0 0.0
    %130 = vmatprep.subr.mxu0 0.0
    %131 = vmatpush2.msra.mxu0 0.0
    %132 = vmatprep.subr.mxu0 0.0
    %133 = vmatpush2.msra.mxu0 0.0
    %134 = vmatprep.subr.mxu0 0.0
    %135 = vmatpush2.msra.mxu0 0.0
    %136 = vmatprep.subr.mxu0 0.0
    %137 = vmatpush2.msra.mxu0 0.0
    %138 = vmatprep.subr.mxu0 0.0
    %139 = vmatpush2.msra.mxu0 0.0
    %140 = vmatprep.subr.mxu0 0.0
    %141 = vmatpush2.msra.mxu0 0.0
    %142 = vmatprep.subr.mxu0 0.0
    %143 = vmatpush2.msra.mxu0 0.0
    %144 = vmatprep.subr.mxu0 0.0
    %145 = vmatpush2.msra.mxu0 0.0
    %146 = vmatprep.subr.mxu0 0.0
    %147 = vmatpush2.msra.mxu0 0.0
    %148 = vmatprep.subr.mxu0 0.0
    %149 = vmatpush2.msra.mxu0 0.0
    %150 = vmatprep.subr.mxu0 0.0
    %151 = vmatpush2.msra.mxu0 0.0
    %152 = vmatprep.subr.mxu0 0.0
    %153 = vmatpush2.msra.mxu0 0.0
    %154 = vmatprep.subr.mxu0 0.0
    %155 = vmatpush2.msra.mxu0 0.0
    %156 = vmatprep.subr.mxu0 0.0
    %157 = vmatpush2.msra.mxu0 0.0
    %158 = vmatprep.mubr.f32.mxu0 0.0
    %159 = vmatmul.mubr.f32.gmra.mxu0 %v76
    %v160 = vpop.f32.mrf.mxu0
    %v161 = vadd.f32 0.0, %v160
    %v162 = vpop.f32.mrf.mxu0
    %163 = vmatprep.mubr.f32.mxu0 0.0
    %164 = vmatmul.mubr.f32.gmra.mxu0 %v77
    %v165 = vpop.f32.mrf.mxu0
    %v166 = vadd.f32 0.0, %v165
    %v167 = vpop.f32.mrf.mxu0
    %168 = vdwg.mxu0
    %p169 = scmp.eq.s32.totalorder 0, 0
    // Predicated region
    $region38: #{tpu_custom_call.1} parent=1 // pred_check
      %p170 = pneg %p169
    $region39: #{tpu_custom_call.1} parent=1 // pred_check_branch
      %172 = sbr.rel (%p170) target = $region41
    $region40: #{tpu_custom_call.1} parent=1 // pred_region
      %v173 = vld [vmem:[%s2] sm:$0x1]
      %v174 = vld [vmem:[#allocation7] sm:$0xff]
      %v175 = vld [vmem:[#allocation7 + $0x8] sm:$0xff]
      %v176 = vld [vmem:[#allocation8] sm:$0xff]
      %v177 = vld [vmem:[#allocation8 + $0x8] sm:$0xff]
      %v178 = vld [vmem:[#allocation8 + $0x10] sm:$0xff]
      %v179 = vld [vmem:[#allocation8 + $0x18] sm:$0xff]
      %v180 = vld [vmem:[#allocation8 + $0x20] sm:$0xff]
      %v181 = vld [vmem:[#allocation8 + $0x28] sm:$0xff]
      %v182 = vld [vmem:[#allocation8 + $0x30] sm:$0xff]
      %v183 = vld [vmem:[#allocation8 + $0x38] sm:$0xff]
      %v184 = vld [vmem:[#allocation8 + $0x40] sm:$0xff]
      %v185 = vld [vmem:[#allocation8 + $0x48] sm:$0xff]
      %v186 = vld [vmem:[#allocation8 + $0x50] sm:$0xff]
      %v187 = vld [vmem:[#allocation8 + $0x58] sm:$0xff]
      %v188 = vld [vmem:[#allocation8 + $0x60] sm:$0xff]
      %v189 = vld [vmem:[#allocation8 + $0x68] sm:$0xff]
      %v190 = vld [vmem:[#allocation8 + $0x70] sm:$0xff]
      %v191 = vld [vmem:[#allocation8 + $0x78] sm:$0xff]
      %192 = vmatprep.subr.mxu0 0.0
      %193 = vmatpush1.msra.mxu0 %v191
      %194 = vmatprep.subr.mxu0 0.0
      %195 = vmatpush1.msra.mxu0 %v190
      %196 = vmatprep.subr.mxu0 0.0
      %197 = vmatpush1.msra.mxu0 %v189
      %198 = vmatprep.subr.mxu0 0.0
      %199 = vmatpush1.msra.mxu0 %v188
      %200 = vmatprep.subr.mxu0 0.0
      %201 = vmatpush1.msra.mxu0 %v187
      %202 = vmatprep.subr.mxu0 0.0
      %203 = vmatpush1.msra.mxu0 %v186
      %204 = vmatprep.subr.mxu0 0.0
      %205 = vmatpush1.msra.mxu0 %v185
      %206 = vmatprep.subr.mxu0 0.0
      %207 = vmatpush1.msra.mxu0 %v184
      %208 = vmatprep.subr.mxu0 0.0
      %209 = vmatpush1.msra.mxu0 %v183
      %210 = vmatprep.subr.mxu0 0.0
      %211 = vmatpush1.msra.mxu0 %v182
      %212 = vmatprep.subr.mxu0 0.0
      %213 = vmatpush1.msra.mxu0 %v181
      %214 = vmatprep.subr.mxu0 0.0
      %215 = vmatpush1.msra.mxu0 %v180
      %216 = vmatprep.subr.mxu0 0.0
      %217 = vmatpush1.msra.mxu0 %v179
      %218 = vmatprep.subr.mxu0 0.0
      %219 = vmatpush1.msra.mxu0 %v178
      %220 = vmatprep.subr.mxu0 0.0
      %221 = vmatpush1.msra.mxu0 %v177
      %222 = vmatprep.subr.mxu0 0.0
      %223 = vmatpush1.msra.mxu0 %v176
      %224 = vmatprep.subr.mxu0 0.0
      %225 = vmatpush2.msra.mxu0 0.0
      %226 = vmatprep.subr.mxu0 0.0
      %227 = vmatpush2.msra.mxu0 0.0
      %228 = vmatprep.subr.mxu0 0.0
      %229 = vmatpush2.msra.mxu0 0.0
      %230 = vmatprep.subr.mxu0 0.0
      %231 = vmatpush2.msra.mxu0 0.0
      %232 = vmatprep.subr.mxu0 0.0
      %233 = vmatpush2.msra.mxu0 0.0
      %234 = vmatprep.subr.mxu0 0.0
      %235 = vmatpush2.msra.mxu0 0.0
      %236 = vmatprep.subr.mxu0 0.0
      %237 = vmatpush2.msra.mxu0 0.0
      %238 = vmatprep.subr.mxu0 0.0
      %239 = vmatpush2.msra.mxu0 0.0
      %240 = vmatprep.subr.mxu0 0.0
      %241 = vmatpush2.msra.mxu0 0.0
      %242 = vmatprep.subr.mxu0 0.0
      %243 = vmatpush2.msra.mxu0 0.0
      %244 = vmatprep.subr.mxu0 0.0
      %245 = vmatpush2.msra.mxu0 0.0
      %246 = vmatprep.subr.mxu0 0.0
      %247 = vmatpush2.msra.mxu0 0.0
      %248 = vmatprep.subr.mxu0 0.0
      %249 = vmatpush2.msra.mxu0 0.0
      %250 = vmatprep.subr.mxu0 0.0
      %251 = vmatpush2.msra.mxu0 0.0
      %252 = vmatprep.subr.mxu0 0.0
      %253 = vmatpush2.msra.mxu0 0.0
      %254 = vmatprep.subr.mxu0 0.0
      %255 = vmatpush2.msra.mxu0 0.0
      %256 = vmatprep.mubr.f32.mxu0 0.0
      %257 = vmatmul.mubr.f32.gmra.mxu0 %v174
      %v258 = vpop.f32.mrf.mxu0
      %v259 = vadd.f32 0.0, %v258
      %v260 = vpop.f32.mrf.mxu0
      %261 = vmatprep.mubr.f32.mxu0 0.0
      %262 = vmatmul.mubr.f32.gmra.mxu0 %v175
      %v263 = vpop.f32.mrf.mxu0
      %v264 = vadd.f32 0.0, %v263
      %v265 = vpop.f32.mrf.mxu0
      %266 = vdwg.mxu0
      %v268 = vlaneseq
      %v269 = vshrl.u32 %v268, 7
      %v270 = vsub.s32 0, %v269
      %v271 = vrot.slane %v173, %v270
      %v273 = vadd.f32 %v271, %v259
      %v274 = vadd.f32 %v271, %v264
      %v275 = vadd.f32 %v273, %v161
      %v276 = vadd.f32 %v274, %v166
      %277 = vst [vmem:[#allocation10] sm:$0xff] %v275
      %278 = vst [vmem:[#allocation10 + $0x8] sm:$0xff] %v276
    $region41: #{tpu_custom_call.1} parent=1 // pred_fallthru
      _
    %p279 = scmp.gt.s32.totalorder 0, 0
    // Predicated region
    $region42: #{tpu_custom_call.1} parent=1 // pred_check
      %p280 = pneg %p279
    $region43: #{tpu_custom_call.1} parent=1 // pred_check_branch
      %282 = sbr.rel (%p280) target = $region45
    $region44: #{tpu_custom_call.1} parent=1 // pred_region
      %v283 = vld [vmem:[#allocation10] sm:$0xff]
      %v284 = vld [vmem:[#allocation10 + $0x8] sm:$0xff]
      %v285 = vadd.f32 %v283, %v161
      %v286 = vadd.f32 %v284, %v166
      %287 = vst [vmem:[#allocation10] sm:$0xff] %v285
      %288 = vst [vmem:[#allocation10 + $0x8] sm:$0xff] %v286
    $region45: #{tpu_custom_call.1} parent=1 // pred_fallthru
      _
    // Predicated region
    $region46: #{tpu_custom_call.1} parent=1 // pred_check
      _
    $region47: #{tpu_custom_call.1} parent=1 // pred_check_branch
      %290 = sbr.rel (0) target = $region49
    $region48: #{tpu_custom_call.1} parent=1 // pred_region
      %s292 = ssub.s32 256, 256
      %293 = vsyncadd [#allocation4], %s292
      %s294 = sshll.u32 [#allocation10], 4
      %s295 = int_to_ptr.vmem [resolvable:$true] %s294
      %300 = dma.vmem_to_hbm [thread:$0]  %s295, 256, %s5, [#allocation4], 128, 128, 8
    $region49: #{tpu_custom_call.1} parent=1 // pred_fallthru
      _
    // Predicated region
    $region50: #{tpu_custom_call.1} parent=1 // pred_check
      _
    $region51: #{tpu_custom_call.1} parent=1 // pred_check_branch
      %302 = sbr.rel (0) target = $region53
    $region52: #{tpu_custom_call.1} parent=1 // pred_region
      %303 = dma.done [#allocation4], 256
    $region53: #{tpu_custom_call.1} parent=1 // pred_fallthru
      _
    %304 = vsyncpa [#allocation3], 1
    %305 = vsyncpa [#allocation6], 1
    %306 = vsyncpa [#allocation9], 1
    %307 = vsyncpa [#allocation4], 1

</llo_original>
